<compile_context>
chip_gen: v7x
topology: tpu7x:2x2x1
jax: 0.10.0
libtpu: 0.0.40
codegen_flags: <defaults>
</compile_context>

<pallas_src>
import math

import jax
import jax.numpy as jnp
from jax import lax
from jax.experimental import pallas as pl
from jax.experimental.pallas import tpu as pltpu


def _round_up(x, m):
    return ((x + m - 1) // m) * m


def _nan0(v):
    # torch.where(torch.isnan(v), 0, v)  (only NaN, not inf)
    return jnp.where(jnp.isnan(v), jnp.zeros_like(v), v)


# ---------------------------------------------------------------------------
# Fused _GraphConv kernel: two SemskeConv layers + tanh + residual.
# ---------------------------------------------------------------------------

def gcn_kernel(x_ref, w1_ref, b1_ref, w2_ref, b2_ref, o_ref):
    x = x_ref[...]
    y = jnp.tanh(jnp.dot(x, w1_ref[...], preferred_element_type=jnp.float32)
                 + b1_ref[...])
    y = jnp.tanh(jnp.dot(y, w2_ref[...], preferred_element_type=jnp.float32)
                 + b2_ref[...])
    o_ref[...] = y + x                       # residual (padded cols are exactly 0)


def _effective_weight(a, w, m, n_pad):
    node = a.shape[0]
    # Exact fold: (x @ (A*W)) @ M == x @ ((A*W) @ M)
    w_eff = (_nan0(a) * _nan0(w)) @ _nan0(m)
    return jnp.pad(w_eff, ((0, n_pad - node), (0, n_pad - node)))


def gcn_forward(xp, layer1, layer2, *, tm_max=256):
    """Fused _GraphConv forward. xp: (B, L, node) f32, node on the lane axis."""
    B, L, node = xp.shape
    n_pad = _round_up(node, 128)             # lane-dense node axis (e.g. 64 -> 128)

    a1, w1, m1, b1 = layer1
    a2, w2, m2, b2 = layer2
    w1e = _effective_weight(a1, w1, m1, n_pad)
    w2e = _effective_weight(a2, w2, m2, n_pad)
    b1p = jnp.pad(b1.reshape(1, node), ((0, 0), (0, n_pad - node)))
    b2p = jnp.pad(b2.reshape(1, node), ((0, 0), (0, n_pad - node)))

    x2d = xp.reshape(-1, node)
    rows = x2d.shape[0]
    tm = tm_max if rows >= tm_max else max(8, _round_up(rows, 8))
    rows_pad = _round_up(rows, tm)
    x2d = jnp.pad(x2d, ((0, rows_pad - rows), (0, n_pad - node)))

    out = pl.pallas_call(
        gcn_kernel,
        out_shape=jax.ShapeDtypeStruct((rows_pad, n_pad), jnp.float32),
        grid=(rows_pad // tm,),
        in_specs=[
            pl.BlockSpec((tm, n_pad), lambda i: (i, 0)),       # x tile (pipelined)
            pl.BlockSpec((n_pad, n_pad), lambda i: (0, 0)),    # W1_eff (resident)
            pl.BlockSpec((1, n_pad), lambda i: (0, 0)),        # bias1  (resident)
            pl.BlockSpec((n_pad, n_pad), lambda i: (0, 0)),    # W2_eff (resident)
            pl.BlockSpec((1, n_pad), lambda i: (0, 0)),        # bias2  (resident)
        ],
        out_specs=pl.BlockSpec((tm, n_pad), lambda i: (i, 0)),
        compiler_params=pltpu.CompilerParams(
            dimension_semantics=("parallel",),                 # 2 TCs on v7x
            vmem_limit_bytes=32 * 1024 * 1024,
        ),
    )(x2d, w1e, b1p, w2e, b2p)

    return out[:rows, :node].reshape(B, L, node)


# ---------------------------------------------------------------------------
# Fused 2-layer GRU + Linear kernel (single pallas_call, fori_loop over time).
# Hidden / input / output feature dims are zero-padded to a multiple of 128;
# padded hidden columns stay exactly 0 through the recurrence
# (gate preact 0 -> z=r=0.5, n=0, h'=0.5*0=0), so slicing back is exact.
# ---------------------------------------------------------------------------

def gru_linear_kernel(x_ref, h0_ref,
                      wi0_ref, wh0_ref, bi0_ref, bh0_ref,
                      wi1_ref, wh1_ref, bi1_ref, bh1_ref,
                      wl_ref, bl_ref,
                      out_ref, hn_ref):
    seq_len = x_ref.shape[0]
    h_pad = hn_ref.shape[-1]

    # Weights live in VMEM for the whole sequence; read once before the loop.
    wi0 = wi0_ref[...]; wh0 = wh0_ref[...]; bi0 = bi0_ref[...]; bh0 = bh0_ref[...]
    wi1 = wi1_ref[...]; wh1 = wh1_ref[...]; bi1 = bi1_ref[...]; bh1 = bh1_ref[...]
    wl = wl_ref[...]; bl = bl_ref[...]

    def cell(gi, h, wh, bh):
        gh = jnp.dot(h, wh, preferred_element_type=jnp.float32) + bh
        r = jax.nn.sigmoid(gi[:, 0:h_pad] + gh[:, 0:h_pad])
        z = jax.nn.sigmoid(gi[:, h_pad:2 * h_pad] + gh[:, h_pad:2 * h_pad])
        n = jnp.tanh(gi[:, 2 * h_pad:3 * h_pad] + r * gh[:, 2 * h_pad:3 * h_pad])
        return (1.0 - z) * n + z * h

    def body(t, carry):
        h0, h1 = carry
        x_t = x_ref[t]                                                  # (B, in_pad)
        gi0 = jnp.dot(x_t, wi0, preferred_element_type=jnp.float32) + bi0
        h0n = cell(gi0, h0, wh0, bh0)
        gi1 = jnp.dot(h0n, wi1, preferred_element_type=jnp.float32) + bi1
        h1n = cell(gi1, h1, wh1, bh1)
        # fused final Linear: lane-dense (B, o_pad) store, unmasked vst
        out_ref[t] = jnp.dot(h1n, wl, preferred_element_type=jnp.float32) + bl
        return (h0n, h1n)

    h_final = lax.fori_loop(0, seq_len, body, (h0_ref[0], h0_ref[1]))
    hn_ref[0] = h_final[0]
    hn_ref[1] = h_final[1]


def _pad_gru_weight(w, in_pad, h, h_pad):
    # w: (in_dim, 3*h), gate order [r, z, n] -> (in_pad, 3*h_pad), zero-padded.
    in_dim = w.shape[0]
    out = jnp.zeros((in_pad, 3 * h_pad), jnp.float32)
    for g in range(3):
        out = out.at[:in_dim, g * h_pad:g * h_pad + h].set(w[:, g * h:(g + 1) * h])
    return out


def _pad_gru_bias(b, h, h_pad):
    out = jnp.zeros((1, 3 * h_pad), jnp.float32)
    for g in range(3):
        out = out.at[0, g * h_pad:g * h_pad + h].set(b[g * h:(g + 1) * h])
    return out


def gru_linear_forward(x_seq, h0, layer0, layer1, wl, bl):
    """x_seq: (T, B, in) time-major. h0: (2, B, H). Returns ((T,B,O), (2,B,H))."""
    T, B, in_dim = x_seq.shape
    L, _, hidden = h0.shape
    assert L == 2, "kernel is specialized for num_layers=2 (module default)"
    out_dim = wl.shape[1]
    h_pad = _round_up(hidden, 128)
    in_pad = _round_up(in_dim, 128)
    o_pad = _round_up(out_dim, 128)

    wi0, wh0, bi0, bh0 = layer0
    wi1, wh1, bi1, bh1 = layer1

    wi0p = _pad_gru_weight(wi0, in_pad, hidden, h_pad)
    wh0p = _pad_gru_weight(wh0, h_pad, hidden, h_pad)
    bi0p = _pad_gru_bias(bi0, hidden, h_pad)
    bh0p = _pad_gru_bias(bh0, hidden, h_pad)
    wi1p = _pad_gru_weight(wi1, h_pad, hidden, h_pad)
    wh1p = _pad_gru_weight(wh1, h_pad, hidden, h_pad)
    bi1p = _pad_gru_bias(bi1, hidden, h_pad)
    bh1p = _pad_gru_bias(bh1, hidden, h_pad)

    # Final Linear, zero-padded to a lane-dense (h_pad, o_pad) tile.
    wlp = jnp.zeros((h_pad, o_pad), jnp.float32).at[:hidden, :out_dim].set(wl)
    blp = jnp.zeros((1, o_pad), jnp.float32).at[0, :out_dim].set(bl)

    x_pad = jnp.pad(x_seq, ((0, 0), (0, 0), (0, in_pad - in_dim)))
    h0p = jnp.pad(h0, ((0, 0), (0, 0), (0, h_pad - hidden)))

    out_seq, hn = pl.pallas_call(
        gru_linear_kernel,
        out_shape=(jax.ShapeDtypeStruct((T, B, o_pad), jnp.float32),
                   jax.ShapeDtypeStruct((L, B, h_pad), jnp.float32)),
        compiler_params=pltpu.CompilerParams(vmem_limit_bytes=32 * 1024 * 1024),
    )(x_pad, h0p, wi0p, wh0p, bi0p, bh0p, wi1p, wh1p, bi1p, bh1p, wlp, blp)

    return out_seq[:, :, :out_dim], hn[:, :, :hidden]


# ---------------------------------------------------------------------------
# Generator forward (Pallas path) and pure-JAX reference.
# ---------------------------------------------------------------------------

def generator_forward(x, gcn_layer1, gcn_layer2, h0, gru_layer0, gru_layer1, wl, bl):
    # x: (B, node, input_size), mirrors Generator.forward.
    xp = jnp.transpose(x, (0, 2, 1))                        # (B, L, node)
    y = gcn_forward(xp, gcn_layer1, gcn_layer2)             # fused _GraphConv
    x_seq = jnp.transpose(y, (2, 0, 1))                     # (T=node, B, L) time-major
    out_seq, hn = gru_linear_forward(x_seq, h0, gru_layer0, gru_layer1, wl, bl)
    out_dim = out_seq.shape[-1]
    out = jnp.transpose(out_seq, (1, 0, 2)).reshape(-1, out_dim)[None]  # (1, B*node, O)
    return out, hn


def _semske_ref(x, a, w, m, b):
    return x @ (_nan0(a) * _nan0(w)) @ _nan0(m) + b


def _graphconv_ref(x, layer1, layer2):
    y = jnp.tanh(_semske_ref(x, *layer1))
    y = jnp.tanh(_semske_ref(y, *layer2))
    return y + x


def _gru_ref(x_seq, h0, layers):
    # x_seq: (B, T, in) batch_first; h0: (L, B, H); gates [r, z, n].
    hidden = h0.shape[-1]

    def step(hs, x_t):
        inp = x_t
        new_hs = []
        for l, (wi, wh, bi, bh) in enumerate(layers):
            h = hs[l]
            gi = inp @ wi + bi
            gh = h @ wh + bh
            r = jax.nn.sigmoid(gi[:, :hidden] + gh[:, :hidden])
            z = jax.nn.sigmoid(gi[:, hidden:2 * hidden] + gh[:, hidden:2 * hidden])
            n = jnp.tanh(gi[:, 2 * hidden:] + r * gh[:, 2 * hidden:])
            hn = (1.0 - z) * n + z * h
            new_hs.append(hn)
            inp = hn
        return jnp.stack(new_hs), inp

    hs_final, outs = lax.scan(step, h0, jnp.transpose(x_seq, (1, 0, 2)))
    return jnp.transpose(outs, (1, 0, 2)), hs_final


def generator_ref(x, gcn_layer1, gcn_layer2, h0, gru_layers, wl, bl):
    xp = jnp.transpose(x, (0, 2, 1))
    y = _graphconv_ref(xp, gcn_layer1, gcn_layer2)
    gru_in = jnp.transpose(y, (0, 2, 1))                    # (B, node, L)
    outs, hn = _gru_ref(gru_in, h0, gru_layers)             # (B, T, H)
    hidden = hn.shape[-1]
    out2d = outs.reshape(-1, hidden) @ wl + bl
    return out2d[None], hn


if __name__ == "__main__":
    node_num = 64
    batch = 2
    input_size = 8
    hidden_size = 32
    output_size = 8
    num_layers = 2

    key = jax.random.PRNGKey(0)
    ks = jax.random.split(key, 20)

    def nn_mat(k, shape, scale=0.1):
        return scale * jax.random.normal(k, shape, dtype=jnp.float32)

    stdv = 1.0 / math.sqrt(node_num)

    # GCN (two SemskeConv). Module zero-inits A_sem/W/M; use small random values
    # (plus a few NaNs to exercise the nan-masking) so the math is non-trivial.
    a1 = nn_mat(ks[0], (node_num, node_num)).at[0, 0].set(jnp.nan)
    w1 = nn_mat(ks[1], (node_num, node_num)).at[3, 7].set(jnp.nan)
    m1 = nn_mat(ks[2], (node_num, node_num))
    b1 = jax.random.uniform(ks[3], (node_num,), jnp.float32, -stdv, stdv)
    a2 = nn_mat(ks[4], (node_num, node_num))
    w2 = nn_mat(ks[5], (node_num, node_num))
    m2 = nn_mat(ks[6], (node_num, node_num)).at[5, 5].set(jnp.nan)
    b2 = jax.random.uniform(ks[7], (node_num,), jnp.float32, -stdv, stdv)
    gcn_layer1 = (a1, w1, m1, b1)
    gcn_layer2 = (a2, w2, m2, b2)

    # GRU (2 layers), torch-style gate order [r, z, n], torch-style init scale.
    gs = 1.0 / math.sqrt(hidden_size)

    def u(k, shape):
        return jax.random.uniform(k, shape, jnp.float32, -gs, gs)

    gru_layer0 = (u(ks[8], (input_size, 3 * hidden_size)),
                  u(ks[9], (hidden_size, 3 * hidden_size)),
                  u(ks[10], (3 * hidden_size,)),
                  u(ks[11], (3 * hidden_size,)))
    gru_layer1 = (u(ks[12], (hidden_size, 3 * hidden_size)),
                  u(ks[13], (hidden_size, 3 * hidden_size)),
                  u(ks[14], (3 * hidden_size,)),
                  u(ks[15], (3 * hidden_size,)))

    # hidden_prev parameter is zero-initialized in the module.
    h0 = jnp.zeros((num_layers, batch, hidden_size), jnp.float32)

    # final Linear(hidden_size, output_size)
    wl = u(ks[16], (hidden_size, output_size))
    bl = u(ks[17], (output_size,))

    # input x: (batch, node_num, input_size), as implied by Generator.forward.
    x = jax.random.normal(ks[18], (batch, node_num, input_size), dtype=jnp.float32)

    out, hn = generator_forward(x, gcn_layer1, gcn_layer2, h0,
                                gru_layer0, gru_layer1, wl, bl)
    out, hn = jax.block_until_ready((out, hn))

    ref_out, ref_hn = generator_ref(x, gcn_layer1, gcn_layer2, h0,
                                    [gru_layer0, gru_layer1], wl, bl)

    assert out.shape == (1, batch * node_num, output_size)
    assert hn.shape == (num_layers, batch, hidden_size)
    assert jnp.allclose(out, ref_out, atol=2e-4, rtol=2e-4), "output mismatch vs reference"
    assert jnp.allclose(hn, ref_hn, atol=2e-4, rtol=2e-4), "hidden mismatch vs reference"

    print("KERNEL_OK")
</pallas_src>

<mosaic_0001>
module attributes {stable_mosaic.version = 11 : i64} {
  func.func @gcn_kernel(%arg0: i32, %arg1: memref<16x128xf32, #tpu.memory_space<vmem>>, %arg2: memref<128x128xf32, #tpu.memory_space<vmem>>, %arg3: memref<1x128xf32, #tpu.memory_space<vmem>>, %arg4: memref<128x128xf32, #tpu.memory_space<vmem>>, %arg5: memref<1x128xf32, #tpu.memory_space<vmem>>, %arg6: memref<16x128xf32, #tpu.memory_space<vmem>>) attributes {dimension_semantics = [#tpu.dimension_semantics<parallel>], iteration_bounds = array<i64: 1>, scalar_prefetch = 0 : i64, scratch_operands = 0 : i64, tpu.core_type = #tpu.core_type<tc>, window_params = [{transform_indices = @transform_0, window_bounds = array<i64: 16, 128>}, {pipeline_mode = #tpu.pipeline_mode<synchronous>, transform_indices = @transform_1, window_bounds = array<i64: 128, 128>}, {pipeline_mode = #tpu.pipeline_mode<synchronous>, transform_indices = @transform_2, window_bounds = array<i64: 1, 128>}, {pipeline_mode = #tpu.pipeline_mode<synchronous>, transform_indices = @transform_3, window_bounds = array<i64: 128, 128>}, {pipeline_mode = #tpu.pipeline_mode<synchronous>, transform_indices = @transform_4, window_bounds = array<i64: 1, 128>}, {transform_indices = @transform_5, window_bounds = array<i64: 16, 128>}]} {
    %c0 = arith.constant 0 : index
    %c0_0 = arith.constant 0 : index
    %0 = vector.load %arg1[%c0, %c0_0] : memref<16x128xf32, #tpu.memory_space<vmem>>, vector<16x128xf32>
    %c0_1 = arith.constant 0 : index
    %c0_2 = arith.constant 0 : index
    %1 = vector.load %arg2[%c0_1, %c0_2] : memref<128x128xf32, #tpu.memory_space<vmem>>, vector<128x128xf32>
    %cst = arith.constant dense<0.000000e+00> : vector<16x128xf32>
    %2 = tpu.matmul %0, %1, %cst {dimension_numbers = #tpu.dot_dimension_numbers<[1], [0], [0], [1], [0, 0, 1, 1], [], []>} : vector<16x128xf32>, vector<128x128xf32>, vector<16x128xf32> -> vector<16x128xf32>
    %c0_3 = arith.constant 0 : index
    %c0_4 = arith.constant 0 : index
    %3 = vector.load %arg3[%c0_3, %c0_4] : memref<1x128xf32, #tpu.memory_space<vmem>>, vector<1x128xf32>
    %4 = vector.broadcast %3 : vector<1x128xf32> to vector<16x128xf32>
    %5 = arith.addf %2, %4 : vector<16x128xf32>
    %6 = math.tanh %5 : vector<16x128xf32>
    %c0_5 = arith.constant 0 : index
    %c0_6 = arith.constant 0 : index
    %7 = vector.load %arg4[%c0_5, %c0_6] : memref<128x128xf32, #tpu.memory_space<vmem>>, vector<128x128xf32>
    %cst_7 = arith.constant dense<0.000000e+00> : vector<16x128xf32>
    %8 = tpu.matmul %6, %7, %cst_7 {dimension_numbers = #tpu.dot_dimension_numbers<[1], [0], [0], [1], [0, 0, 1, 1], [], []>} : vector<16x128xf32>, vector<128x128xf32>, vector<16x128xf32> -> vector<16x128xf32>
    %c0_8 = arith.constant 0 : index
    %c0_9 = arith.constant 0 : index
    %9 = vector.load %arg5[%c0_8, %c0_9] : memref<1x128xf32, #tpu.memory_space<vmem>>, vector<1x128xf32>
    %10 = vector.broadcast %9 : vector<1x128xf32> to vector<16x128xf32>
    %11 = arith.addf %8, %10 : vector<16x128xf32>
    %12 = math.tanh %11 : vector<16x128xf32>
    %13 = arith.addf %12, %0 : vector<16x128xf32>
    %c0_10 = arith.constant 0 : index
    %c0_11 = arith.constant 0 : index
    %14 = vector.load %arg6[%c0_10, %c0_11] : memref<16x128xf32, #tpu.memory_space<vmem>>, vector<16x128xf32>
    tpu.vector_store %arg6[%c0_10, %c0_11], %13 {strides = array<i32>} : memref<16x128xf32, #tpu.memory_space<vmem>>, vector<16x128xf32>,
    return
  }
  func.func @transform_0(%arg0: i32) -> (i32, i32) {
    %c0_i32 = arith.constant 0 : i32
    %c0_i32_0 = arith.constant 0 : i32
    return %arg0, %c0_i32 : i32, i32
  }
  func.func @transform_1(%arg0: i32) -> (i32, i32) {
    %c0_i32 = arith.constant 0 : i32
    %c0_i32_0 = arith.constant 0 : i32
    %c0_i32_1 = arith.constant 0 : i32
    return %c0_i32, %c0_i32_0 : i32, i32
  }
  func.func @transform_2(%arg0: i32) -> (i32, i32) {
    %c0_i32 = arith.constant 0 : i32
    %c0_i32_0 = arith.constant 0 : i32
    %c0_i32_1 = arith.constant 0 : i32
    return %c0_i32, %c0_i32_0 : i32, i32
  }
  func.func @transform_3(%arg0: i32) -> (i32, i32) {
    %c0_i32 = arith.constant 0 : i32
    %c0_i32_0 = arith.constant 0 : i32
    %c0_i32_1 = arith.constant 0 : i32
    return %c0_i32, %c0_i32_0 : i32, i32
  }
  func.func @transform_4(%arg0: i32) -> (i32, i32) {
    %c0_i32 = arith.constant 0 : i32
    %c0_i32_0 = arith.constant 0 : i32
    %c0_i32_1 = arith.constant 0 : i32
    return %c0_i32, %c0_i32_0 : i32, i32
  }
  func.func @transform_5(%arg0: i32) -> (i32, i32) {
    %c0_i32 = arith.constant 0 : i32
    %c0_i32_0 = arith.constant 0 : i32
    return %arg0, %c0_i32 : i32, i32
  }
}

</mosaic_0001>

<llo_original>
// kernel: tpu_custom_call.1
$region0: #{tpu_custom_call.1}
  #allocation0 [shape = 'u32[]', space=smem, size = 0x4, offset = 0x4, fixed_abs, tag = 'smem constant byte address 0x4 - core index']
  #allocation1 [shape = 'u32[144,128]{1,0:T(1,128)}', space=vmem, size = 0x12000, scoped, tag = 'internal scratch']
  %s0 = inlined_call_operand.hbm [shape: f32[16,128], index: 0, kind: input, shape index: {}]
  %s1 = inlined_call_operand.hbm [shape: f32[128,128], index: 1, kind: input, shape index: {}]
  %s2 = inlined_call_operand.vmem [shape: f32[1,128], index: 2, kind: input, shape index: {}]
  %s3 = inlined_call_operand.hbm [shape: f32[128,128], index: 3, kind: input, shape index: {}]
  %s4 = inlined_call_operand.vmem [shape: f32[1,128], index: 4, kind: input, shape index: {}]
  %s5 = inlined_call_operand.hbm [shape: f32[16,128], index: 5, kind: output, shape index: {}]
  %s6 = sld [smem:[#allocation0]]
  $region42: #{tpu_custom_call.1} parent=0
    _
  %s8 = ssub.s32 1, %s6
  %s9 = scalar_select 0, %s8, %s6
  $region1: #{tpu_custom_call.1} parent=0
    #allocation2 [shape = 'u8[8192]{0}', space=vmem, size = 0x2000, scoped, tag = 'input window, operand 0, single buffered']
    #allocation3 [shape = 's32[1]{0}', space=sflag, size = 0x4, scoped, tag = 'scoped memory for tpu_custom_call.1']
    #allocation4 [shape = 's32[1]{0}', space=sflag, size = 0x4, scoped, tag = 'scoped memory for tpu_custom_call.1']
    #allocation5 [shape = 'u8[65536]{0}', space=vmem, size = 0x10000, scoped, tag = 'input window, operand 1, single buffered']
    #allocation6 [shape = 's32[1]{0}', space=sflag, size = 0x4, scoped, tag = 'scoped memory for tpu_custom_call.1']
    #allocation7 [shape = 'u8[65536]{0}', space=vmem, size = 0x10000, scoped, tag = 'input window, operand 3, single buffered']
    #allocation8 [shape = 'u8[8192]{0}', space=vmem, size = 0x2000, scoped, tag = 'output window, operand 0, single buffered']
    %10 = vsyncpa [#allocation3], 0
    %11 = vsyncpa [#allocation6], 0
    %12 = vsyncpa [#allocation4], 0
    // Predicated region
    $region2: #{tpu_custom_call.1} parent=1 // pred_check
      _
    $region3: #{tpu_custom_call.1} parent=1 // pred_check_branch
      %14 = sbr.rel (0) target = $region5
    $region4: #{tpu_custom_call.1} parent=1 // pred_region
      %s16 = ssub.s32 256, 256
      %17 = vsyncadd [#allocation3], %s16
      %s18 = sshll.u32 [#allocation2], 4
      %s19 = int_to_ptr.vmem [resolvable:$true] %s18
      %24 = dma.hbm_to_vmem [thread:$0]  %s0, 256, %s19, [#allocation3], 128, 128, 8
    $region5: #{tpu_custom_call.1} parent=1 // pred_fallthru
      _
    // Predicated region
    $region6: #{tpu_custom_call.1} parent=1 // pred_check
      _
    $region7: #{tpu_custom_call.1} parent=1 // pred_check_branch
      %26 = sbr.rel (0) target = $region9
    $region8: #{tpu_custom_call.1} parent=1 // pred_region
      %s28 = ssub.s32 2048, 2048
      %29 = vsyncadd [#allocation6], %s28
      %s30 = sshll.u32 [#allocation5], 4
      %s31 = int_to_ptr.vmem [resolvable:$true] %s30
      %36 = dma.hbm_to_vmem [thread:$0]  %s1, 2048, %s31, [#allocation6], 128, 128, 8
    $region9: #{tpu_custom_call.1} parent=1 // pred_fallthru
      _
    // Predicated region
    $region10: #{tpu_custom_call.1} parent=1 // pred_check
      _
    $region11: #{tpu_custom_call.1} parent=1 // pred_check_branch
      %38 = sbr.rel (0) target = $region13
    $region12: #{tpu_custom_call.1} parent=1 // pred_region
      _
    $region13: #{tpu_custom_call.1} parent=1 // pred_fallthru
      _
    // Predicated region
    $region14: #{tpu_custom_call.1} parent=1 // pred_check
      _
    $region15: #{tpu_custom_call.1} parent=1 // pred_check_branch
      %40 = sbr.rel (0) target = $region17
    $region16: #{tpu_custom_call.1} parent=1 // pred_region
      %s42 = ssub.s32 2048, 2048
      %43 = vsyncadd [#allocation6], %s42
      %s44 = sshll.u32 [#allocation7], 4
      %s45 = int_to_ptr.vmem [resolvable:$true] %s44
      %50 = dma.hbm_to_vmem [thread:$0]  %s3, 2048, %s45, [#allocation6], 128, 128, 8
    $region17: #{tpu_custom_call.1} parent=1 // pred_fallthru
      _
    // Predicated region
    $region18: #{tpu_custom_call.1} parent=1 // pred_check
      _
    $region19: #{tpu_custom_call.1} parent=1 // pred_check_branch
      %52 = sbr.rel (0) target = $region21
    $region20: #{tpu_custom_call.1} parent=1 // pred_region
      _
    $region21: #{tpu_custom_call.1} parent=1 // pred_fallthru
      _
    // Predicated region
    $region22: #{tpu_custom_call.1} parent=1 // pred_check
      _
    $region23: #{tpu_custom_call.1} parent=1 // pred_check_branch
      %54 = sbr.rel (0) target = $region25
    $region24: #{tpu_custom_call.1} parent=1 // pred_region
      %55 = dma.done [#allocation3], 256
    $region25: #{tpu_custom_call.1} parent=1 // pred_fallthru
      _
    // Predicated region
    $region26: #{tpu_custom_call.1} parent=1 // pred_check
      _
    $region27: #{tpu_custom_call.1} parent=1 // pred_check_branch
      %57 = sbr.rel (0) target = $region29
    $region28: #{tpu_custom_call.1} parent=1 // pred_region
      %58 = dma.done [#allocation6], 2048
    $region29: #{tpu_custom_call.1} parent=1 // pred_fallthru
      _
    // Predicated region
    $region30: #{tpu_custom_call.1} parent=1 // pred_check
      _
    $region31: #{tpu_custom_call.1} parent=1 // pred_check_branch
      %60 = sbr.rel (0) target = $region33
    $region32: #{tpu_custom_call.1} parent=1 // pred_region
      %61 = dma.done [#allocation6], 2048
    $region33: #{tpu_custom_call.1} parent=1 // pred_fallthru
      _
    %v62 = vld [vmem:[#allocation2] sm:$0xff]
    %v63 = vld [vmem:[#allocation2 + $0x8] sm:$0xff]
    %v64 = vld [vmem:[#allocation5] sm:$0xff]
    %v65 = vld [vmem:[#allocation5 + $0x8] sm:$0xff]
    %v66 = vld [vmem:[#allocation5 + $0x10] sm:$0xff]
    %v67 = vld [vmem:[#allocation5 + $0x18] sm:$0xff]
    %v68 = vld [vmem:[#allocation5 + $0x20] sm:$0xff]
    %v69 = vld [vmem:[#allocation5 + $0x28] sm:$0xff]
    %v70 = vld [vmem:[#allocation5 + $0x30] sm:$0xff]
    %v71 = vld [vmem:[#allocation5 + $0x38] sm:$0xff]
    %v72 = vld [vmem:[#allocation5 + $0x40] sm:$0xff]
    %v73 = vld [vmem:[#allocation5 + $0x48] sm:$0xff]
    %v74 = vld [vmem:[#allocation5 + $0x50] sm:$0xff]
    %v75 = vld [vmem:[#allocation5 + $0x58] sm:$0xff]
    %v76 = vld [vmem:[#allocation5 + $0x60] sm:$0xff]
    %v77 = vld [vmem:[#allocation5 + $0x68] sm:$0xff]
    %v78 = vld [vmem:[#allocation5 + $0x70] sm:$0xff]
    %v79 = vld [vmem:[#allocation5 + $0x78] sm:$0xff]
    %v80 = vld [vmem:[%s2] sm:$0x1]
    %v82 = vlaneseq
    %v83 = vshrl.u32 %v82, 7
    %v84 = vsub.s32 0, %v83
    %v85 = vrot.slane %v80, %v84
    %87 = vmatprep.subr.mxu0 0.0
    %88 = vmatpush1.msra.mxu0 %v64
    %89 = vmatprep.subr.mxu0 0.0
    %90 = vmatpush1.msra.mxu0 %v65
    %91 = vmatprep.subr.mxu0 0.0
    %92 = vmatpush1.msra.mxu0 %v66
    %93 = vmatprep.subr.mxu0 0.0
    %94 = vmatpush1.msra.mxu0 %v67
    %95 = vmatprep.subr.mxu0 0.0
    %96 = vmatpush1.msra.mxu0 %v68
    %97 = vmatprep.subr.mxu0 0.0
    %98 = vmatpush1.msra.mxu0 %v69
    %99 = vmatprep.subr.mxu0 0.0
    %100 = vmatpush1.msra.mxu0 %v70
    %101 = vmatprep.subr.mxu0 0.0
    %102 = vmatpush1.msra.mxu0 %v71
    %103 = vmatprep.subr.mxu0 0.0
    %104 = vmatpush1.msra.mxu0 %v72
    %105 = vmatprep.subr.mxu0 0.0
    %106 = vmatpush1.msra.mxu0 %v73
    %107 = vmatprep.subr.mxu0 0.0
    %108 = vmatpush1.msra.mxu0 %v74
    %109 = vmatprep.subr.mxu0 0.0
    %110 = vmatpush1.msra.mxu0 %v75
    %111 = vmatprep.subr.mxu0 0.0
    %112 = vmatpush1.msra.mxu0 %v76
    %113 = vmatprep.subr.mxu0 0.0
    %114 = vmatpush1.msra.mxu0 %v77
    %115 = vmatprep.subr.mxu0 0.0
    %116 = vmatpush1.msra.mxu0 %v78
    %117 = vmatprep.subr.mxu0 0.0
    %118 = vmatpush1.msra.mxu0 %v79
    %119 = vmatprep.subr.mxu0 0.0
    %120 = vmatpush1.msra.mxu0 0.0
    %121 = vmatprep.subr.mxu0 0.0
    %122 = vmatpush1.msra.mxu0 0.0
    %123 = vmatprep.subr.mxu0 0.0
    %124 = vmatpush1.msra.mxu0 0.0
    %125 = vmatprep.subr.mxu0 0.0
    %126 = vmatpush1.msra.mxu0 0.0
    %127 = vmatprep.subr.mxu0 0.0
    %128 = vmatpush1.msra.mxu0 0.0
    %129 = vmatprep.subr.mxu0 0.0
    %130 = vmatpush1.msra.mxu0 0.0
    %131 = vmatprep.subr.mxu0 0.0
    %132 = vmatpush1.msra.mxu0 0.0
    %133 = vmatprep.subr.mxu0 0.0
    %134 = vmatpush1.msra.mxu0 0.0
    %135 = vmatprep.subr.mxu0 0.0
    %136 = vmatpush1.msra.mxu0 0.0
    %137 = vmatprep.subr.mxu0 0.0
    %138 = vmatpush1.msra.mxu0 0.0
    %139 = vmatprep.subr.mxu0 0.0
    %140 = vmatpush1.msra.mxu0 0.0
    %141 = vmatprep.subr.mxu0 0.0
    %142 = vmatpush1.msra.mxu0 0.0
    %143 = vmatprep.subr.mxu0 0.0
    %144 = vmatpush1.msra.mxu0 0.0
    %145 = vmatprep.subr.mxu0 0.0
    %146 = vmatpush1.msra.mxu0 0.0
    %147 = vmatprep.subr.mxu0 0.0
    %148 = vmatpush1.msra.mxu0 0.0
    %149 = vmatprep.subr.mxu0 0.0
    %150 = vmatpush1.msra.mxu0 0.0
    %151 = vmatprep.mubr.f32.mxu0 0.0
    %152 = vmatmul.mubr.f32.gmra.mrb[0].mxu0 %v62
    %v153 = vpop.f32.mrb[0].mxu0
    %v154 = vadd.f32 %v85, %v153
    %v155 = vpop.f32.mrb[0].mxu0
    %156 = vmatprep.mubr.f32.mxu0 0.0
    %157 = vmatmul.mubr.f32.gmra.mrb[0].mxu0 %v63
    %v158 = vpop.f32.mrb[0].mxu0
    %v159 = vadd.f32 %v85, %v158
    %v160 = vpop.f32.mrb[0].mxu0
    %161 = vdwg.mxu0
    %v162 = vtanh.pop %v154
    %v163 = vtanh.pop %v159
    %v164 = vld [vmem:[#allocation7] sm:$0xff]
    %v165 = vld [vmem:[#allocation7 + $0x8] sm:$0xff]
    %v166 = vld [vmem:[#allocation7 + $0x10] sm:$0xff]
    %v167 = vld [vmem:[#allocation7 + $0x18] sm:$0xff]
    %v168 = vld [vmem:[#allocation7 + $0x20] sm:$0xff]
    %v169 = vld [vmem:[#allocation7 + $0x28] sm:$0xff]
    %v170 = vld [vmem:[#allocation7 + $0x30] sm:$0xff]
    %v171 = vld [vmem:[#allocation7 + $0x38] sm:$0xff]
    %v172 = vld [vmem:[#allocation7 + $0x40] sm:$0xff]
    %v173 = vld [vmem:[#allocation7 + $0x48] sm:$0xff]
    %v174 = vld [vmem:[#allocation7 + $0x50] sm:$0xff]
    %v175 = vld [vmem:[#allocation7 + $0x58] sm:$0xff]
    %v176 = vld [vmem:[#allocation7 + $0x60] sm:$0xff]
    %v177 = vld [vmem:[#allocation7 + $0x68] sm:$0xff]
    %v178 = vld [vmem:[#allocation7 + $0x70] sm:$0xff]
    %v179 = vld [vmem:[#allocation7 + $0x78] sm:$0xff]
    %v180 = vld [vmem:[%s4] sm:$0x1]
    %v182 = vlaneseq
    %v183 = vshrl.u32 %v182, 7
    %v184 = vsub.s32 0, %v183
    %v185 = vrot.slane %v180, %v184
    %187 = vmatprep.subr.mxu0 0.0
    %188 = vmatpush1.msra.mxu0 %v164
    %189 = vmatprep.subr.mxu0 0.0
    %190 = vmatpush1.msra.mxu0 %v165
    %191 = vmatprep.subr.mxu0 0.0
    %192 = vmatpush1.msra.mxu0 %v166
    %193 = vmatprep.subr.mxu0 0.0
    %194 = vmatpush1.msra.mxu0 %v167
    %195 = vmatprep.subr.mxu0 0.0
    %196 = vmatpush1.msra.mxu0 %v168
    %197 = vmatprep.subr.mxu0 0.0
    %198 = vmatpush1.msra.mxu0 %v169
    %199 = vmatprep.subr.mxu0 0.0
    %200 = vmatpush1.msra.mxu0 %v170
    %201 = vmatprep.subr.mxu0 0.0
    %202 = vmatpush1.msra.mxu0 %v171
    %203 = vmatprep.subr.mxu0 0.0
    %204 = vmatpush1.msra.mxu0 %v172
    %205 = vmatprep.subr.mxu0 0.0
    %206 = vmatpush1.msra.mxu0 %v173
    %207 = vmatprep.subr.mxu0 0.0
    %208 = vmatpush1.msra.mxu0 %v174
    %209 = vmatprep.subr.mxu0 0.0
    %210 = vmatpush1.msra.mxu0 %v175
    %211 = vmatprep.subr.mxu0 0.0
    %212 = vmatpush1.msra.mxu0 %v176
    %213 = vmatprep.subr.mxu0 0.0
    %214 = vmatpush1.msra.mxu0 %v177
    %215 = vmatprep.subr.mxu0 0.0
    %216 = vmatpush1.msra.mxu0 %v178
    %217 = vmatprep.subr.mxu0 0.0
    %218 = vmatpush1.msra.mxu0 %v179
    %219 = vmatprep.subr.mxu0 0.0
    %220 = vmatpush1.msra.mxu0 0.0
    %221 = vmatprep.subr.mxu0 0.0
    %222 = vmatpush1.msra.mxu0 0.0
    %223 = vmatprep.subr.mxu0 0.0
    %224 = vmatpush1.msra.mxu0 0.0
    %225 = vmatprep.subr.mxu0 0.0
    %226 = vmatpush1.msra.mxu0 0.0
    %227 = vmatprep.subr.mxu0 0.0
    %228 = vmatpush1.msra.mxu0 0.0
    %229 = vmatprep.subr.mxu0 0.0
    %230 = vmatpush1.msra.mxu0 0.0
    %231 = vmatprep.subr.mxu0 0.0
    %232 = vmatpush1.msra.mxu0 0.0
    %233 = vmatprep.subr.mxu0 0.0
    %234 = vmatpush1.msra.mxu0 0.0
    %235 = vmatprep.subr.mxu0 0.0
    %236 = vmatpush1.msra.mxu0 0.0
    %237 = vmatprep.subr.mxu0 0.0
    %238 = vmatpush1.msra.mxu0 0.0
    %239 = vmatprep.subr.mxu0 0.0
    %240 = vmatpush1.msra.mxu0 0.0
    %241 = vmatprep.subr.mxu0 0.0
    %242 = vmatpush1.msra.mxu0 0.0
    %243 = vmatprep.subr.mxu0 0.0
    %244 = vmatpush1.msra.mxu0 0.0
    %245 = vmatprep.subr.mxu0 0.0
    %246 = vmatpush1.msra.mxu0 0.0
    %247 = vmatprep.subr.mxu0 0.0
    %248 = vmatpush1.msra.mxu0 0.0
    %249 = vmatprep.subr.mxu0 0.0
    %250 = vmatpush1.msra.mxu0 0.0
    %251 = vmatprep.mubr.f32.mxu0 0.0
    %252 = vmatmul.mubr.f32.gmra.mrb[0].mxu0 %v162
    %v253 = vpop.f32.mrb[0].mxu0
    %v254 = vadd.f32 %v185, %v253
    %v255 = vpop.f32.mrb[0].mxu0
    %256 = vmatprep.mubr.f32.mxu0 0.0
    %257 = vmatmul.mubr.f32.gmra.mrb[0].mxu0 %v163
    %v258 = vpop.f32.mrb[0].mxu0
    %v259 = vadd.f32 %v185, %v258
    %v260 = vpop.f32.mrb[0].mxu0
    %261 = vdwg.mxu0
    %v262 = vtanh.pop %v254
    %v263 = vtanh.pop %v259
    %v264 = vadd.f32 %v262, %v62
    %v265 = vadd.f32 %v263, %v63
    %266 = vst [vmem:[#allocation8] sm:$0xff] %v264
    %267 = vst [vmem:[#allocation8 + $0x8] sm:$0xff] %v265
    // Predicated region
    $region34: #{tpu_custom_call.1} parent=1 // pred_check
      _
    $region35: #{tpu_custom_call.1} parent=1 // pred_check_branch
      %269 = sbr.rel (0) target = $region37
    $region36: #{tpu_custom_call.1} parent=1 // pred_region
      %s271 = ssub.s32 256, 256
      %272 = vsyncadd [#allocation4], %s271
      %s273 = sshll.u32 [#allocation8], 4
      %s274 = int_to_ptr.vmem [resolvable:$true] %s273
      %279 = dma.vmem_to_hbm [thread:$0]  %s274, 256, %s5, [#allocation4], 128, 128, 8
    $region37: #{tpu_custom_call.1} parent=1 // pred_fallthru
      _
    // Predicated region
    $region38: #{tpu_custom_call.1} parent=1 // pred_check
      _
    $region39: #{tpu_custom_call.1} parent=1 // pred_check_branch
      %281 = sbr.rel (0) target = $region41
    $region40: #{tpu_custom_call.1} parent=1 // pred_region
      %282 = dma.done [#allocation4], 256
    $region41: #{tpu_custom_call.1} parent=1 // pred_fallthru
      _
    %283 = vsyncpa [#allocation3], 1
    %284 = vsyncpa [#allocation6], 1
    %285 = vsyncpa [#allocation4], 1

</llo_original>
